<compile_context>
chip_gen: v6e
topology: v6e:2x2x1
jax: 0.10.0
libtpu: 0.0.40
codegen_flags: <defaults>
</compile_context>

<pallas_src>
import functools

import jax
import jax.numpy as jnp
import numpy as np
from jax.experimental import pallas as pl
from jax.experimental.pallas import tpu as pltpu


# --------------------------------------------------------------------------
# Kernel
# --------------------------------------------------------------------------
def autoencoder_kernel(x_ref,
                       w1_ref, b1_ref,
                       w2_ref, b2_ref,
                       w3_ref, b3_ref,
                       w4_ref, b4_ref,
                       o_ref):
    # Hoist all loads once per tile.
    # In-kernel VPU cast of x to bf16 (hides under the MXU; keeps the HBM
    # stream for x at 4 B/elem with no separate wrapper-side convert op).
    x = x_ref[...].astype(jnp.bfloat16)
    w1, w2, w3, w4 = w1_ref[...], w2_ref[...], w3_ref[...], w4_ref[...]
    b1, b2, b3, b4 = b1_ref[...], b2_ref[...], b3_ref[...], b4_ref[...]

    cast = w1.dtype  # bf16 for MXU operands only; elementwise path stays f32

    # encoder: bf16 MXU operands, f32 accumulation, f32 elementwise (VPU/EUP)
    h1 = jnp.dot(x, w1, preferred_element_type=jnp.float32) + b1
    h1 = jnp.maximum(h1, 0.0)
    z = jnp.dot(h1.astype(cast), w2, preferred_element_type=jnp.float32) + b2
    z = jnp.maximum(z, 0.0)

    # decoder
    h2 = jnp.dot(z.astype(cast), w3, preferred_element_type=jnp.float32) + b3
    h2 = jnp.maximum(h2, 0.0)
    y = jnp.dot(h2.astype(cast), w4, preferred_element_type=jnp.float32) + b4

    # Exact sigmoid: exp -> EUP, exact divide. Cost is negligible here and
    # keeps the user-visible output free of approximate-reciprocal error.
    o_ref[...] = (1.0 / (1.0 + jnp.exp(-y))).astype(o_ref.dtype)


# --------------------------------------------------------------------------
# One-time parameter preprocessing (do NOT call per forward)
# --------------------------------------------------------------------------
def _round_up(n, m):
    return ((n + m - 1) // m) * m


def _pad_to(a, axis, target):
    pad = target - a.shape[axis]
    if pad == 0:
        return a
    widths = [(0, 0)] * a.ndim
    widths[axis] = (0, pad)
    return jnp.pad(a, widths)


def prepare_params(params):
    """Zero-pad input/hidden/latent dims to multiples of 128 and cast weights
    to bf16. Exact: ReLU(0)=0 and padded weight rows/cols are zero. Call once
    and reuse the result for every forward."""
    w1, b1 = params["w1"], params["b1"]   # (in,  hid), (1, hid)
    w2, b2 = params["w2"], params["b2"]   # (hid, lat), (1, lat)
    w3, b3 = params["w3"], params["b3"]   # (lat, hid), (1, hid)
    w4, b4 = params["w4"], params["b4"]   # (hid, in),  (1, in)

    in_size, hid = w1.shape
    lat = w2.shape[1]
    in_p = _round_up(in_size, 128)
    hid_p = _round_up(hid, 128)
    lat_p = _round_up(lat, 128)

    w1p = _pad_to(_pad_to(w1, 0, in_p), 1, hid_p).astype(jnp.bfloat16)
    b1p = _pad_to(b1, 1, hid_p).astype(jnp.float32)
    w2p = _pad_to(_pad_to(w2, 0, hid_p), 1, lat_p).astype(jnp.bfloat16)
    b2p = _pad_to(b2, 1, lat_p).astype(jnp.float32)
    w3p = _pad_to(_pad_to(w3, 0, lat_p), 1, hid_p).astype(jnp.bfloat16)
    b3p = _pad_to(b3, 1, hid_p).astype(jnp.float32)
    w4p = _pad_to(_pad_to(w4, 0, hid_p), 1, in_p).astype(jnp.bfloat16)
    b4p = _pad_to(b4, 1, in_p).astype(jnp.float32)

    return dict(input_size=in_size, in_p=in_p, hid_p=hid_p, lat_p=lat_p,
                w1=w1p, b1=b1p, w2=w2p, b2=b2p,
                w3=w3p, b3=b3p, w4=w4p, b4=b4p)


# --------------------------------------------------------------------------
# Generation-aware tiling helpers
# --------------------------------------------------------------------------
@functools.lru_cache(maxsize=1)
def _vmem_capacity_bytes():
    try:
        info = pltpu.get_tpu_info()
        cap = getattr(info, "vmem_capacity_bytes", None)
        if isinstance(cap, int) and cap > 0:
            return cap
    except Exception:
        pass
    return None


@functools.lru_cache(maxsize=1)
def _num_tensorcores():
    """Best-effort TensorCore-per-chip count (v7x = 2, v5e/v6e = 1)."""
    try:
        info = pltpu.get_tpu_info()
        for attr in ("num_tensorcores", "tensorcore_count", "num_cores",
                     "cores_per_chip", "num_tensor_cores"):
            n = getattr(info, attr, None)
            if isinstance(n, int) and n > 0:
                return n
    except Exception:
        pass
    try:
        kind = jax.devices()[0].device_kind.lower()
        if "v7" in kind:
            return 2
    except Exception:
        pass
    return 1


def _choose_tile_b(B, tile_b, num_tc, vmem_cap_bytes):
    """Pick a batch tile: big tiles to amortize per-step overhead, an even
    step count when there are 2 TensorCores, no forced split on 1-TC chips."""
    # Per-row footprint is ~5 KiB; cap the tile by VMEM generation.
    small_vmem = vmem_cap_bytes is not None and vmem_cap_bytes <= (64 << 20)
    cap = 2048 if small_vmem else 4096
    want = max(8, min(tile_b, cap, B))

    # Candidate tiles: divisors of B that are multiples of 8.
    cands = [d for d in range(8, B + 1, 8) if B % d == 0]
    if not cands:
        return B  # tiny/odd batch: single full-extent block (always legal)

    if num_tc >= 2:
        even = [d for d in cands if (B // d) % num_tc == 0]
        if even:
            cands = even  # equal step counts on both TensorCores

    le = [d for d in cands if d <= want]
    return max(le) if le else min(cands)


def _resident_spec(shape):
    """Constant-index (grid-resident) operand; single-buffered when supported."""
    index_map = lambda i: (0,) * len(shape)
    if hasattr(pl, "Buffered"):
        try:
            return pl.BlockSpec(shape, index_map, pipeline_mode=pl.Buffered(1))
        except Exception:
            pass
    return pl.BlockSpec(shape, index_map)


# --------------------------------------------------------------------------
# Forward wrapper
# --------------------------------------------------------------------------
def autoencoder_forward(x, prep, *, tile_b=1024, out_dtype=jnp.float32):
    """x: (B, input_size) f32. prep: output of prepare_params()."""
    B, input_size = x.shape
    assert input_size == prep["input_size"]
    in_p, hid_p, lat_p = prep["in_p"], prep["hid_p"], prep["lat_p"]

    # Only taken when input_size isn't already a multiple of 128 (e.g. 784):
    # costs one pass over x but buys lane-dense stores and MXU-aligned K/N.
    if in_p != input_size:
        x = jnp.pad(x, ((0, 0), (0, in_p - input_size)))

    num_tc = _num_tensorcores()
    vmem_cap = _vmem_capacity_bytes()
    tb = _choose_tile_b(B, tile_b, num_tc, vmem_cap)
    grid = (B // tb,) if B % tb == 0 else (1,)
    if grid == (1,):
        tb = B

    out_bytes = jnp.dtype(out_dtype).itemsize

    # VMEM budget from the actual footprint (double-buffered x/out tiles,
    # single-buffered resident weights, f32+bf16 intermediates) + headroom.
    weight_bytes = 2 * (in_p * hid_p + hid_p * lat_p + lat_p * hid_p + hid_p * in_p)
    bias_bytes = 4 * (2 * hid_p + lat_p + in_p)
    tile_bytes = tb * (in_p * 4 * 2 + in_p * out_bytes * 2
                       + (2 * hid_p + lat_p + in_p) * 6)
    vmem_limit = int(min(max(2 * (weight_bytes + bias_bytes + tile_bytes),
                             16 << 20), 48 << 20))

    flops = 2 * B * (in_p * hid_p + hid_p * lat_p + lat_p * hid_p + hid_p * in_p)
    transcendentals = B * in_p                         # exp in the sigmoid
    bytes_accessed = B * in_p * (4 + out_bytes) + weight_bytes + bias_bytes
    cost = pl.CostEstimate(flops=flops, transcendentals=transcendentals,
                           bytes_accessed=bytes_accessed)

    out = pl.pallas_call(
        autoencoder_kernel,
        out_shape=jax.ShapeDtypeStruct((B, in_p), out_dtype),
        grid_spec=pltpu.PrefetchScalarGridSpec(
            num_scalar_prefetch=0,
            grid=grid,
            in_specs=[
                pl.BlockSpec((tb, in_p), lambda i: (i, 0)),        # x tile (f32)
                _resident_spec(prep["w1"].shape), _resident_spec(prep["b1"].shape),
                _resident_spec(prep["w2"].shape), _resident_spec(prep["b2"].shape),
                _resident_spec(prep["w3"].shape), _resident_spec(prep["b3"].shape),
                _resident_spec(prep["w4"].shape), _resident_spec(prep["b4"].shape),
            ],
            out_specs=pl.BlockSpec((tb, in_p), lambda i: (i, 0)),
        ),
        compiler_params=pltpu.CompilerParams(
            dimension_semantics=("parallel",),
            vmem_limit_bytes=vmem_limit,
        ),
        cost_estimate=cost,
    )(x, prep["w1"], prep["b1"], prep["w2"], prep["b2"],
      prep["w3"], prep["b3"], prep["w4"], prep["b4"])

    if in_p != input_size:
        out = out[:, :input_size]
    return out


# --------------------------------------------------------------------------
# Parameter init (PyTorch nn.Linear default init) and pure-JAX reference
# --------------------------------------------------------------------------
def init_params(key, input_size, hidden_size, output_size):
    """U[-1/sqrt(fan_in), +1/sqrt(fan_in)]; weights stored as (fan_in, fan_out)."""
    def linear(k, fan_in, fan_out):
        kw, kb = jax.random.split(k)
        bound = 1.0 / np.sqrt(fan_in)
        w = jax.random.uniform(kw, (fan_in, fan_out), jnp.float32, -bound, bound)
        b = jax.random.uniform(kb, (1, fan_out), jnp.float32, -bound, bound)
        return w, b

    k1, k2, k3, k4 = jax.random.split(key, 4)
    w1, b1 = linear(k1, input_size, hidden_size)
    w2, b2 = linear(k2, hidden_size, output_size)
    w3, b3 = linear(k3, output_size, hidden_size)
    w4, b4 = linear(k4, hidden_size, input_size)
    return dict(w1=w1, b1=b1, w2=w2, b2=b2, w3=w3, b3=b3, w4=w4, b4=b4)


def reference_forward(x, p):
    """Reference with the same bf16-operand / f32-accumulate dots for a tight check."""
    def mm(a, w):
        return jnp.dot(a.astype(jnp.bfloat16), w.astype(jnp.bfloat16),
                       preferred_element_type=jnp.float32)
    h = jnp.maximum(mm(x, p["w1"]) + p["b1"], 0.0)
    z = jnp.maximum(mm(h, p["w2"]) + p["b2"], 0.0)
    h = jnp.maximum(mm(z, p["w3"]) + p["b3"], 0.0)
    return jax.nn.sigmoid(mm(h, p["w4"]) + p["b4"])


if __name__ == "__main__":
    # Small MNIST-like shapes: batch=64, input=256, hidden=128, latent=64.
    B, INPUT, HIDDEN, LATENT = 64, 256, 128, 64

    key = jax.random.PRNGKey(0)
    kx, kp = jax.random.split(key)
    x = jax.random.uniform(kx, (B, INPUT), jnp.float32)     # pixel-like inputs in [0,1)
    params = init_params(kp, INPUT, HIDDEN, LATENT)

    prep = prepare_params(params)                           # one-time preprocessing
    out = jax.block_until_ready(autoencoder_forward(x, prep))
    ref = jax.block_until_ready(reference_forward(x, params))

    # bf16 MXU operands: allow bf16-level deviation.
    np.testing.assert_allclose(np.asarray(out), np.asarray(ref), rtol=5e-3, atol=5e-3)

    print("KERNEL_OK")
</pallas_src>

<mosaic_0001>
module attributes {stable_mosaic.version = 11 : i64} {
  func.func @autoencoder_kernel(%arg0: i32, %arg1: memref<64x256xf32, #tpu.memory_space<vmem>>, %arg2: memref<256x128xbf16, #tpu.memory_space<vmem>>, %arg3: memref<1x128xf32, #tpu.memory_space<vmem>>, %arg4: memref<128x128xbf16, #tpu.memory_space<vmem>>, %arg5: memref<1x128xf32, #tpu.memory_space<vmem>>, %arg6: memref<128x128xbf16, #tpu.memory_space<vmem>>, %arg7: memref<1x128xf32, #tpu.memory_space<vmem>>, %arg8: memref<128x256xbf16, #tpu.memory_space<vmem>>, %arg9: memref<1x256xf32, #tpu.memory_space<vmem>>, %arg10: memref<64x256xf32, #tpu.memory_space<vmem>>) attributes {dimension_semantics = [#tpu.dimension_semantics<parallel>], iteration_bounds = array<i64: 1>, scalar_prefetch = 0 : i64, scratch_operands = 0 : i64, tpu.core_type = #tpu.core_type<tc>, window_params = [{transform_indices = @transform_0, window_bounds = array<i64: 64, 256>}, {pipeline_mode = #tpu.pipeline_mode<synchronous>, transform_indices = @transform_1, window_bounds = array<i64: 256, 128>}, {pipeline_mode = #tpu.pipeline_mode<synchronous>, transform_indices = @transform_2, window_bounds = array<i64: 1, 128>}, {pipeline_mode = #tpu.pipeline_mode<synchronous>, transform_indices = @transform_3, window_bounds = array<i64: 128, 128>}, {pipeline_mode = #tpu.pipeline_mode<synchronous>, transform_indices = @transform_4, window_bounds = array<i64: 1, 128>}, {pipeline_mode = #tpu.pipeline_mode<synchronous>, transform_indices = @transform_5, window_bounds = array<i64: 128, 128>}, {pipeline_mode = #tpu.pipeline_mode<synchronous>, transform_indices = @transform_6, window_bounds = array<i64: 1, 128>}, {pipeline_mode = #tpu.pipeline_mode<synchronous>, transform_indices = @transform_7, window_bounds = array<i64: 128, 256>}, {pipeline_mode = #tpu.pipeline_mode<synchronous>, transform_indices = @transform_8, window_bounds = array<i64: 1, 256>}, {transform_indices = @transform_9, window_bounds = array<i64: 64, 256>}]} {
    %c0 = arith.constant 0 : index
    %c0_0 = arith.constant 0 : index
    %0 = vector.load %arg1[%c0, %c0_0] : memref<64x256xf32, #tpu.memory_space<vmem>>, vector<64x256xf32>
    %1 = arith.truncf %0 : vector<64x256xf32> to vector<64x256xbf16>
    %c0_1 = arith.constant 0 : index
    %c0_2 = arith.constant 0 : index
    %2 = vector.load %arg2[%c0_1, %c0_2] : memref<256x128xbf16, #tpu.memory_space<vmem>>, vector<256x128xbf16>
    %c0_3 = arith.constant 0 : index
    %c0_4 = arith.constant 0 : index
    %3 = vector.load %arg4[%c0_3, %c0_4] : memref<128x128xbf16, #tpu.memory_space<vmem>>, vector<128x128xbf16>
    %c0_5 = arith.constant 0 : index
    %c0_6 = arith.constant 0 : index
    %4 = vector.load %arg6[%c0_5, %c0_6] : memref<128x128xbf16, #tpu.memory_space<vmem>>, vector<128x128xbf16>
    %c0_7 = arith.constant 0 : index
    %c0_8 = arith.constant 0 : index
    %5 = vector.load %arg8[%c0_7, %c0_8] : memref<128x256xbf16, #tpu.memory_space<vmem>>, vector<128x256xbf16>
    %c0_9 = arith.constant 0 : index
    %c0_10 = arith.constant 0 : index
    %6 = vector.load %arg3[%c0_9, %c0_10] : memref<1x128xf32, #tpu.memory_space<vmem>>, vector<1x128xf32>
    %c0_11 = arith.constant 0 : index
    %c0_12 = arith.constant 0 : index
    %7 = vector.load %arg5[%c0_11, %c0_12] : memref<1x128xf32, #tpu.memory_space<vmem>>, vector<1x128xf32>
    %c0_13 = arith.constant 0 : index
    %c0_14 = arith.constant 0 : index
    %8 = vector.load %arg7[%c0_13, %c0_14] : memref<1x128xf32, #tpu.memory_space<vmem>>, vector<1x128xf32>
    %c0_15 = arith.constant 0 : index
    %c0_16 = arith.constant 0 : index
    %9 = vector.load %arg9[%c0_15, %c0_16] : memref<1x256xf32, #tpu.memory_space<vmem>>, vector<1x256xf32>
    %cst = arith.constant dense<0.000000e+00> : vector<64x128xf32>
    %10 = tpu.matmul %1, %2, %cst {dimension_numbers = #tpu.dot_dimension_numbers<[1], [0], [0], [1], [0, 0, 1, 1], [], []>} : vector<64x256xbf16>, vector<256x128xbf16>, vector<64x128xf32> -> vector<64x128xf32>
    %11 = vector.broadcast %6 : vector<1x128xf32> to vector<64x128xf32>
    %12 = arith.addf %10, %11 : vector<64x128xf32>
    %cst_17 = arith.constant 0.000000e+00 : f32
    %13 = vector.broadcast %cst_17 : f32 to vector<64x128xf32>
    %14 = arith.maximumf %12, %13 : vector<64x128xf32>
    %15 = arith.truncf %14 : vector<64x128xf32> to vector<64x128xbf16>
    %cst_18 = arith.constant dense<0.000000e+00> : vector<64x128xf32>
    %16 = tpu.matmul %15, %3, %cst_18 {dimension_numbers = #tpu.dot_dimension_numbers<[1], [0], [0], [1], [0, 0, 1, 1], [], []>} : vector<64x128xbf16>, vector<128x128xbf16>, vector<64x128xf32> -> vector<64x128xf32>
    %17 = vector.broadcast %7 : vector<1x128xf32> to vector<64x128xf32>
    %18 = arith.addf %16, %17 : vector<64x128xf32>
    %cst_19 = arith.constant 0.000000e+00 : f32
    %19 = vector.broadcast %cst_19 : f32 to vector<64x128xf32>
    %20 = arith.maximumf %18, %19 : vector<64x128xf32>
    %21 = arith.truncf %20 : vector<64x128xf32> to vector<64x128xbf16>
    %cst_20 = arith.constant dense<0.000000e+00> : vector<64x128xf32>
    %22 = tpu.matmul %21, %4, %cst_20 {dimension_numbers = #tpu.dot_dimension_numbers<[1], [0], [0], [1], [0, 0, 1, 1], [], []>} : vector<64x128xbf16>, vector<128x128xbf16>, vector<64x128xf32> -> vector<64x128xf32>
    %23 = vector.broadcast %8 : vector<1x128xf32> to vector<64x128xf32>
    %24 = arith.addf %22, %23 : vector<64x128xf32>
    %cst_21 = arith.constant 0.000000e+00 : f32
    %25 = vector.broadcast %cst_21 : f32 to vector<64x128xf32>
    %26 = arith.maximumf %24, %25 : vector<64x128xf32>
    %27 = arith.truncf %26 : vector<64x128xf32> to vector<64x128xbf16>
    %cst_22 = arith.constant dense<0.000000e+00> : vector<64x256xf32>
    %28 = tpu.matmul %27, %5, %cst_22 {dimension_numbers = #tpu.dot_dimension_numbers<[1], [0], [0], [1], [0, 0, 1, 1], [], []>} : vector<64x128xbf16>, vector<128x256xbf16>, vector<64x256xf32> -> vector<64x256xf32>
    %29 = vector.broadcast %9 : vector<1x256xf32> to vector<64x256xf32>
    %30 = arith.addf %28, %29 : vector<64x256xf32>
    %cst_23 = arith.constant 0.000000e+00 : f32
    %31 = vector.broadcast %cst_23 : f32 to vector<64x256xf32>
    %32 = arith.subf %31, %30 : vector<64x256xf32>
    %33 = math.exp %32 : vector<64x256xf32>
    %cst_24 = arith.constant 1.000000e+00 : f32
    %34 = vector.broadcast %cst_24 : f32 to vector<64x256xf32>
    %35 = arith.addf %34, %33 : vector<64x256xf32>
    %cst_25 = arith.constant 1.000000e+00 : f32
    %36 = vector.broadcast %cst_25 : f32 to vector<64x256xf32>
    %37 = arith.divf %36, %35 : vector<64x256xf32>
    %c0_26 = arith.constant 0 : index
    %c0_27 = arith.constant 0 : index
    %38 = vector.load %arg10[%c0_26, %c0_27] : memref<64x256xf32, #tpu.memory_space<vmem>>, vector<64x256xf32>
    tpu.vector_store %arg10[%c0_26, %c0_27], %37 {strides = array<i32>} : memref<64x256xf32, #tpu.memory_space<vmem>>, vector<64x256xf32>,
    return
  }
  func.func @transform_0(%arg0: i32) -> (i32, i32) {
    %c0_i32 = arith.constant 0 : i32
    %c0_i32_0 = arith.constant 0 : i32
    return %arg0, %c0_i32 : i32, i32
  }
  func.func @transform_1(%arg0: i32) -> (i32, i32) {
    %c0_i32 = arith.constant 0 : i32
    %c0_i32_0 = arith.constant 0 : i32
    %c0_i32_1 = arith.constant 0 : i32
    return %c0_i32, %c0_i32_0 : i32, i32
  }
  func.func @transform_2(%arg0: i32) -> (i32, i32) {
    %c0_i32 = arith.constant 0 : i32
    %c0_i32_0 = arith.constant 0 : i32
    %c0_i32_1 = arith.constant 0 : i32
    return %c0_i32, %c0_i32_0 : i32, i32
  }
  func.func @transform_3(%arg0: i32) -> (i32, i32) {
    %c0_i32 = arith.constant 0 : i32
    %c0_i32_0 = arith.constant 0 : i32
    %c0_i32_1 = arith.constant 0 : i32
    return %c0_i32, %c0_i32_0 : i32, i32
  }
  func.func @transform_4(%arg0: i32) -> (i32, i32) {
    %c0_i32 = arith.constant 0 : i32
    %c0_i32_0 = arith.constant 0 : i32
    %c0_i32_1 = arith.constant 0 : i32
    return %c0_i32, %c0_i32_0 : i32, i32
  }
  func.func @transform_5(%arg0: i32) -> (i32, i32) {
    %c0_i32 = arith.constant 0 : i32
    %c0_i32_0 = arith.constant 0 : i32
    %c0_i32_1 = arith.constant 0 : i32
    return %c0_i32, %c0_i32_0 : i32, i32
  }
  func.func @transform_6(%arg0: i32) -> (i32, i32) {
    %c0_i32 = arith.constant 0 : i32
    %c0_i32_0 = arith.constant 0 : i32
    %c0_i32_1 = arith.constant 0 : i32
    return %c0_i32, %c0_i32_0 : i32, i32
  }
  func.func @transform_7(%arg0: i32) -> (i32, i32) {
    %c0_i32 = arith.constant 0 : i32
    %c0_i32_0 = arith.constant 0 : i32
    %c0_i32_1 = arith.constant 0 : i32
    return %c0_i32, %c0_i32_0 : i32, i32
  }
  func.func @transform_8(%arg0: i32) -> (i32, i32) {
    %c0_i32 = arith.constant 0 : i32
    %c0_i32_0 = arith.constant 0 : i32
    %c0_i32_1 = arith.constant 0 : i32
    return %c0_i32, %c0_i32_0 : i32, i32
  }
  func.func @transform_9(%arg0: i32) -> (i32, i32) {
    %c0_i32 = arith.constant 0 : i32
    %c0_i32_0 = arith.constant 0 : i32
    return %arg0, %c0_i32 : i32, i32
  }
}

</mosaic_0001>

<llo_original>
// kernel: tpu_custom_call.1
$region0: #{tpu_custom_call.1}
  #allocation0 [shape = 'u32[]', space=smem, size = 0x4, offset = 0x4, fixed_abs, tag = 'smem constant byte address 0x4 - core index']
  #allocation1 [shape = 'u32[144,128]{1,0:T(1,128)}', space=vmem, size = 0x12000, scoped, tag = 'internal scratch']
  %s0 = inlined_call_operand.hbm [shape: f32[64,256], index: 0, kind: input, shape index: {}]
  %s1 = inlined_call_operand.hbm [shape: bf16[256,128], index: 1, kind: input, shape index: {}]
  %s2 = inlined_call_operand.vmem [shape: f32[1,128], index: 2, kind: input, shape index: {}]
  %s3 = inlined_call_operand.hbm [shape: bf16[128,128], index: 3, kind: input, shape index: {}]
  %s4 = inlined_call_operand.vmem [shape: f32[1,128], index: 4, kind: input, shape index: {}]
  %s5 = inlined_call_operand.hbm [shape: bf16[128,128], index: 5, kind: input, shape index: {}]
  %s6 = inlined_call_operand.vmem [shape: f32[1,128], index: 6, kind: input, shape index: {}]
  %s7 = inlined_call_operand.hbm [shape: bf16[128,256], index: 7, kind: input, shape index: {}]
  %s8 = inlined_call_operand.vmem [shape: f32[1,256], index: 8, kind: input, shape index: {}]
  %s9 = inlined_call_operand.hbm [shape: f32[64,256], index: 9, kind: output, shape index: {}]
  %s10 = sld [smem:[#allocation0]]
  $region66: #{tpu_custom_call.1} parent=0
    _
  %s12 = ssub.s32 1, %s10
  %s13 = scalar_select 0, %s12, %s10
  $region1: #{tpu_custom_call.1} parent=0
    #allocation2 [shape = 'u8[65536]{0}', space=vmem, size = 0x10000, scoped, tag = 'input window, operand 0, single buffered']
    #allocation3 [shape = 's32[1]{0}', space=sflag, size = 0x4, scoped, tag = 'scoped memory for tpu_custom_call.1']
    #allocation4 [shape = 's32[1]{0}', space=sflag, size = 0x4, scoped, tag = 'scoped memory for tpu_custom_call.1']
    #allocation5 [shape = 'u8[65536]{0}', space=vmem, size = 0x10000, scoped, tag = 'input window, operand 1, single buffered']
    #allocation6 [shape = 's32[1]{0}', space=sflag, size = 0x4, scoped, tag = 'scoped memory for tpu_custom_call.1']
    #allocation7 [shape = 'u8[32768]{0}', space=vmem, size = 0x8000, scoped, tag = 'input window, operand 3, single buffered']
    #allocation8 [shape = 'u8[32768]{0}', space=vmem, size = 0x8000, scoped, tag = 'input window, operand 5, single buffered']
    #allocation9 [shape = 's32[1]{0}', space=sflag, size = 0x4, scoped, tag = 'scoped memory for tpu_custom_call.1']
    #allocation10 [shape = 'u8[65536]{0}', space=vmem, size = 0x10000, scoped, tag = 'input window, operand 7, single buffered']
    #allocation11 [shape = 'u8[65536]{0}', space=vmem, size = 0x10000, scoped, tag = 'output window, operand 0, single buffered']
    %14 = vsyncpa [#allocation3], 0
    %15 = vsyncpa [#allocation6], 0
    %16 = vsyncpa [#allocation9], 0
    %17 = vsyncpa [#allocation4], 0
    // Predicated region
    $region2: #{tpu_custom_call.1} parent=1 // pred_check
      _
    $region3: #{tpu_custom_call.1} parent=1 // pred_check_branch
      %19 = sbr.rel (0) target = $region5
    $region4: #{tpu_custom_call.1} parent=1 // pred_region
      %s21 = ssub.s32 2048, 2048
      %22 = vsyncadd [#allocation3], %s21
      %s23 = sshll.u32 [#allocation2], 4
      %s24 = int_to_ptr.vmem [resolvable:$true] %s23
      %29 = dma.hbm_to_vmem [thread:$0]  %s0, 2048, %s24, [#allocation3], 256, 256, 16
    $region5: #{tpu_custom_call.1} parent=1 // pred_fallthru
      _
    // Predicated region
    $region6: #{tpu_custom_call.1} parent=1 // pred_check
      _
    $region7: #{tpu_custom_call.1} parent=1 // pred_check_branch
      %31 = sbr.rel (0) target = $region9
    $region8: #{tpu_custom_call.1} parent=1 // pred_region
      %s33 = ssub.s32 2048, 2048
      %34 = vsyncadd [#allocation6], %s33
      %s35 = sshll.u32 [#allocation5], 4
      %s36 = int_to_ptr.vmem [resolvable:$true] %s35
      %41 = dma.hbm_to_vmem [thread:$0]  %s1, 2048, %s36, [#allocation6], 64, 64, 4
    $region9: #{tpu_custom_call.1} parent=1 // pred_fallthru
      _
    // Predicated region
    $region10: #{tpu_custom_call.1} parent=1 // pred_check
      _
    $region11: #{tpu_custom_call.1} parent=1 // pred_check_branch
      %43 = sbr.rel (0) target = $region13
    $region12: #{tpu_custom_call.1} parent=1 // pred_region
      _
    $region13: #{tpu_custom_call.1} parent=1 // pred_fallthru
      _
    // Predicated region
    $region14: #{tpu_custom_call.1} parent=1 // pred_check
      _
    $region15: #{tpu_custom_call.1} parent=1 // pred_check_branch
      %45 = sbr.rel (0) target = $region17
    $region16: #{tpu_custom_call.1} parent=1 // pred_region
      %s47 = ssub.s32 1024, 1024
      %48 = vsyncadd [#allocation6], %s47
      %s49 = sshll.u32 [#allocation7], 4
      %s50 = int_to_ptr.vmem [resolvable:$true] %s49
      %55 = dma.hbm_to_vmem [thread:$0]  %s3, 1024, %s50, [#allocation6], 64, 64, 4
    $region17: #{tpu_custom_call.1} parent=1 // pred_fallthru
      _
    // Predicated region
    $region18: #{tpu_custom_call.1} parent=1 // pred_check
      _
    $region19: #{tpu_custom_call.1} parent=1 // pred_check_branch
      %57 = sbr.rel (0) target = $region21
    $region20: #{tpu_custom_call.1} parent=1 // pred_region
      _
    $region21: #{tpu_custom_call.1} parent=1 // pred_fallthru
      _
    // Predicated region
    $region22: #{tpu_custom_call.1} parent=1 // pred_check
      _
    $region23: #{tpu_custom_call.1} parent=1 // pred_check_branch
      %59 = sbr.rel (0) target = $region25
    $region24: #{tpu_custom_call.1} parent=1 // pred_region
      %s61 = ssub.s32 1024, 1024
      %62 = vsyncadd [#allocation9], %s61
      %s63 = sshll.u32 [#allocation8], 4
      %s64 = int_to_ptr.vmem [resolvable:$true] %s63
      %69 = dma.hbm_to_vmem [thread:$0]  %s5, 1024, %s64, [#allocation9], 64, 64, 4
    $region25: #{tpu_custom_call.1} parent=1 // pred_fallthru
      _
    // Predicated region
    $region26: #{tpu_custom_call.1} parent=1 // pred_check
      _
    $region27: #{tpu_custom_call.1} parent=1 // pred_check_branch
      %71 = sbr.rel (0) target = $region29
    $region28: #{tpu_custom_call.1} parent=1 // pred_region
      _
    $region29: #{tpu_custom_call.1} parent=1 // pred_fallthru
      _
    // Predicated region
    $region30: #{tpu_custom_call.1} parent=1 // pred_check
      _
    $region31: #{tpu_custom_call.1} parent=1 // pred_check_branch
      %73 = sbr.rel (0) target = $region33
    $region32: #{tpu_custom_call.1} parent=1 // pred_region
      %s75 = ssub.s32 2048, 2048
      %76 = vsyncadd [#allocation9], %s75
      %s77 = sshll.u32 [#allocation10], 4
      %s78 = int_to_ptr.vmem [resolvable:$true] %s77
      %83 = dma.hbm_to_vmem [thread:$0]  %s7, 2048, %s78, [#allocation9], 128, 128, 8
    $region33: #{tpu_custom_call.1} parent=1 // pred_fallthru
      _
    // Predicated region
    $region34: #{tpu_custom_call.1} parent=1 // pred_check
      _
    $region35: #{tpu_custom_call.1} parent=1 // pred_check_branch
      %85 = sbr.rel (0) target = $region37
    $region36: #{tpu_custom_call.1} parent=1 // pred_region
      _
    $region37: #{tpu_custom_call.1} parent=1 // pred_fallthru
      _
    // Predicated region
    $region38: #{tpu_custom_call.1} parent=1 // pred_check
      _
    $region39: #{tpu_custom_call.1} parent=1 // pred_check_branch
      %87 = sbr.rel (0) target = $region41
    $region40: #{tpu_custom_call.1} parent=1 // pred_region
      %88 = dma.done [#allocation3], 2048
    $region41: #{tpu_custom_call.1} parent=1 // pred_fallthru
      _
    // Predicated region
    $region42: #{tpu_custom_call.1} parent=1 // pred_check
      _
    $region43: #{tpu_custom_call.1} parent=1 // pred_check_branch
      %90 = sbr.rel (0) target = $region45
    $region44: #{tpu_custom_call.1} parent=1 // pred_region
      %91 = dma.done [#allocation6], 2048
    $region45: #{tpu_custom_call.1} parent=1 // pred_fallthru
      _
    // Predicated region
    $region46: #{tpu_custom_call.1} parent=1 // pred_check
      _
    $region47: #{tpu_custom_call.1} parent=1 // pred_check_branch
      %93 = sbr.rel (0) target = $region49
    $region48: #{tpu_custom_call.1} parent=1 // pred_region
      %94 = dma.done [#allocation6], 1024
    $region49: #{tpu_custom_call.1} parent=1 // pred_fallthru
      _
    // Predicated region
    $region50: #{tpu_custom_call.1} parent=1 // pred_check
      _
    $region51: #{tpu_custom_call.1} parent=1 // pred_check_branch
      %96 = sbr.rel (0) target = $region53
    $region52: #{tpu_custom_call.1} parent=1 // pred_region
      %97 = dma.done [#allocation9], 1024
    $region53: #{tpu_custom_call.1} parent=1 // pred_fallthru
      _
    // Predicated region
    $region54: #{tpu_custom_call.1} parent=1 // pred_check
      _
    $region55: #{tpu_custom_call.1} parent=1 // pred_check_branch
      %99 = sbr.rel (0) target = $region57
    $region56: #{tpu_custom_call.1} parent=1 // pred_region
      %100 = dma.done [#allocation9], 2048
    $region57: #{tpu_custom_call.1} parent=1 // pred_fallthru
      _
    %v102 = vld [vmem:[#allocation2] sm:$0xff]
    %v103 = vld [vmem:[#allocation2 + $0x8] sm:$0xff]
    %v104 = vld [vmem:[#allocation2 + $0x10] sm:$0xff]
    %v105 = vld [vmem:[#allocation2 + $0x18] sm:$0xff]
    %v106 = vld [vmem:[#allocation2 + $0x20] sm:$0xff]
    %v107 = vld [vmem:[#allocation2 + $0x28] sm:$0xff]
    %v108 = vld [vmem:[#allocation2 + $0x30] sm:$0xff]
    %v109 = vld [vmem:[#allocation2 + $0x38] sm:$0xff]
    %v110 = vld [vmem:[#allocation2 + $0x40] sm:$0xff]
    %v111 = vld [vmem:[#allocation2 + $0x48] sm:$0xff]
    %v112 = vld [vmem:[#allocation2 + $0x50] sm:$0xff]
    %v113 = vld [vmem:[#allocation2 + $0x58] sm:$0xff]
    %v114 = vld [vmem:[#allocation2 + $0x60] sm:$0xff]
    %v115 = vld [vmem:[#allocation2 + $0x68] sm:$0xff]
    %v116 = vld [vmem:[#allocation2 + $0x70] sm:$0xff]
    %v117 = vld [vmem:[#allocation2 + $0x78] sm:$0xff]
    %v118 = vpack.c.bf16 %v104, %v102
    %v119 = vpack.c.bf16 %v105, %v103
    %v120 = vpack.c.bf16 %v108, %v106
    %v121 = vpack.c.bf16 %v109, %v107
    %v122 = vpack.c.bf16 %v112, %v110
    %v123 = vpack.c.bf16 %v113, %v111
    %v124 = vpack.c.bf16 %v116, %v114
    %v125 = vpack.c.bf16 %v117, %v115
    %v126 = vld [vmem:[#allocation5] sm:$0xf]
    %v127 = vld [vmem:[#allocation5 + $0x4] sm:$0xf]
    %v128 = vld [vmem:[#allocation5 + $0x8] sm:$0xf]
    %v129 = vld [vmem:[#allocation5 + $0xc] sm:$0xf]
    %v130 = vld [vmem:[#allocation5 + $0x10] sm:$0xf]
    %v131 = vld [vmem:[#allocation5 + $0x14] sm:$0xf]
    %v132 = vld [vmem:[#allocation5 + $0x18] sm:$0xf]
    %v133 = vld [vmem:[#allocation5 + $0x1c] sm:$0xf]
    %v134 = vld [vmem:[#allocation5 + $0x20] sm:$0xf]
    %v135 = vld [vmem:[#allocation5 + $0x24] sm:$0xf]
    %v136 = vld [vmem:[#allocation5 + $0x28] sm:$0xf]
    %v137 = vld [vmem:[#allocation5 + $0x2c] sm:$0xf]
    %v138 = vld [vmem:[#allocation5 + $0x30] sm:$0xf]
    %v139 = vld [vmem:[#allocation5 + $0x34] sm:$0xf]
    %v140 = vld [vmem:[#allocation5 + $0x38] sm:$0xf]
    %v141 = vld [vmem:[#allocation5 + $0x3c] sm:$0xf]
    %v142 = vld [vmem:[#allocation5 + $0x40] sm:$0xf]
    %v143 = vld [vmem:[#allocation5 + $0x44] sm:$0xf]
    %v144 = vld [vmem:[#allocation5 + $0x48] sm:$0xf]
    %v145 = vld [vmem:[#allocation5 + $0x4c] sm:$0xf]
    %v146 = vld [vmem:[#allocation5 + $0x50] sm:$0xf]
    %v147 = vld [vmem:[#allocation5 + $0x54] sm:$0xf]
    %v148 = vld [vmem:[#allocation5 + $0x58] sm:$0xf]
    %v149 = vld [vmem:[#allocation5 + $0x5c] sm:$0xf]
    %v150 = vld [vmem:[#allocation5 + $0x60] sm:$0xf]
    %v151 = vld [vmem:[#allocation5 + $0x64] sm:$0xf]
    %v152 = vld [vmem:[#allocation5 + $0x68] sm:$0xf]
    %v153 = vld [vmem:[#allocation5 + $0x6c] sm:$0xf]
    %v154 = vld [vmem:[#allocation5 + $0x70] sm:$0xf]
    %v155 = vld [vmem:[#allocation5 + $0x74] sm:$0xf]
    %v156 = vld [vmem:[#allocation5 + $0x78] sm:$0xf]
    %v157 = vld [vmem:[#allocation5 + $0x7c] sm:$0xf]
    %v158 = vld [vmem:[#allocation7] sm:$0xf]
    %v159 = vld [vmem:[#allocation7 + $0x4] sm:$0xf]
    %v160 = vld [vmem:[#allocation7 + $0x8] sm:$0xf]
    %v161 = vld [vmem:[#allocation7 + $0xc] sm:$0xf]
    %v162 = vld [vmem:[#allocation7 + $0x10] sm:$0xf]
    %v163 = vld [vmem:[#allocation7 + $0x14] sm:$0xf]
    %v164 = vld [vmem:[#allocation7 + $0x18] sm:$0xf]
    %v165 = vld [vmem:[#allocation7 + $0x1c] sm:$0xf]
    %v166 = vld [vmem:[#allocation7 + $0x20] sm:$0xf]
    %v167 = vld [vmem:[#allocation7 + $0x24] sm:$0xf]
    %v168 = vld [vmem:[#allocation7 + $0x28] sm:$0xf]
    %v169 = vld [vmem:[#allocation7 + $0x2c] sm:$0xf]
    %v170 = vld [vmem:[#allocation7 + $0x30] sm:$0xf]
    %v171 = vld [vmem:[#allocation7 + $0x34] sm:$0xf]
    %v172 = vld [vmem:[#allocation7 + $0x38] sm:$0xf]
    %v173 = vld [vmem:[#allocation7 + $0x3c] sm:$0xf]
    %v174 = vld [vmem:[#allocation8] sm:$0xf]
    %v175 = vld [vmem:[#allocation8 + $0x4] sm:$0xf]
    %v176 = vld [vmem:[#allocation8 + $0x8] sm:$0xf]
    %v177 = vld [vmem:[#allocation8 + $0xc] sm:$0xf]
    %v178 = vld [vmem:[#allocation8 + $0x10] sm:$0xf]
    %v179 = vld [vmem:[#allocation8 + $0x14] sm:$0xf]
    %v180 = vld [vmem:[#allocation8 + $0x18] sm:$0xf]
    %v181 = vld [vmem:[#allocation8 + $0x1c] sm:$0xf]
    %v182 = vld [vmem:[#allocation8 + $0x20] sm:$0xf]
    %v183 = vld [vmem:[#allocation8 + $0x24] sm:$0xf]
    %v184 = vld [vmem:[#allocation8 + $0x28] sm:$0xf]
    %v185 = vld [vmem:[#allocation8 + $0x2c] sm:$0xf]
    %v186 = vld [vmem:[#allocation8 + $0x30] sm:$0xf]
    %v187 = vld [vmem:[#allocation8 + $0x34] sm:$0xf]
    %v188 = vld [vmem:[#allocation8 + $0x38] sm:$0xf]
    %v189 = vld [vmem:[#allocation8 + $0x3c] sm:$0xf]
    %v190 = vld [vmem:[#allocation10] sm:$0xff]
    %v191 = vld [vmem:[#allocation10 + $0x8] sm:$0xff]
    %v192 = vld [vmem:[#allocation10 + $0x10] sm:$0xff]
    %v193 = vld [vmem:[#allocation10 + $0x18] sm:$0xff]
    %v194 = vld [vmem:[#allocation10 + $0x20] sm:$0xff]
    %v195 = vld [vmem:[#allocation10 + $0x28] sm:$0xff]
    %v196 = vld [vmem:[#allocation10 + $0x30] sm:$0xff]
    %v197 = vld [vmem:[#allocation10 + $0x38] sm:$0xff]
    %v198 = vld [vmem:[#allocation10 + $0x40] sm:$0xff]
    %v199 = vld [vmem:[#allocation10 + $0x48] sm:$0xff]
    %v200 = vld [vmem:[#allocation10 + $0x50] sm:$0xff]
    %v201 = vld [vmem:[#allocation10 + $0x58] sm:$0xff]
    %v202 = vld [vmem:[#allocation10 + $0x60] sm:$0xff]
    %v203 = vld [vmem:[#allocation10 + $0x68] sm:$0xff]
    %v204 = vld [vmem:[#allocation10 + $0x70] sm:$0xff]
    %v205 = vld [vmem:[#allocation10 + $0x78] sm:$0xff]
    %v206 = vld [vmem:[%s2] sm:$0x1]
    %v207 = vld [vmem:[%s4] sm:$0x1]
    %v208 = vld [vmem:[%s6] sm:$0x1]
    %v209 = vld [vmem:[%s8] sm:$0x3]
    %v211 = vlaneseq
    %v212 = vshrl.u32 %v211, 7
    %v213 = vsub.s32 0, %v212
    %v214 = vrot.slane %v206, %v213
    %v248 = vunpack.c.l.b16 %v126
    %v249 = vunpack.c.l.b16 %v127
    %v250 = vunpack.c.l.b16 %v128
    %v251 = vunpack.c.l.b16 %v129
    %v252 = vunpack.c.l.b16 %v130
    %v253 = vunpack.c.l.b16 %v131
    %v254 = vunpack.c.l.b16 %v132
    %v255 = vunpack.c.l.b16 %v133
    %v256 = vunpack.c.l.b16 %v134
    %v257 = vunpack.c.l.b16 %v135
    %v258 = vunpack.c.l.b16 %v136
    %v259 = vunpack.c.l.b16 %v137
    %v260 = vunpack.c.l.b16 %v138
    %v261 = vunpack.c.l.b16 %v139
    %v262 = vunpack.c.l.b16 %v140
    %v263 = vunpack.c.l.b16 %v141
    %v264 = vunpack.c.l.b16 %v142
    %v265 = vunpack.c.l.b16 %v143
    %v266 = vunpack.c.l.b16 %v144
    %v267 = vunpack.c.l.b16 %v145
    %v268 = vunpack.c.l.b16 %v146
    %v269 = vunpack.c.l.b16 %v147
    %v270 = vunpack.c.l.b16 %v148
    %v271 = vunpack.c.l.b16 %v149
    %v272 = vunpack.c.l.b16 %v150
    %v273 = vunpack.c.l.b16 %v151
    %v274 = vunpack.c.l.b16 %v152
    %v275 = vunpack.c.l.b16 %v153
    %v276 = vunpack.c.l.b16 %v154
    %v277 = vunpack.c.l.b16 %v155
    %v278 = vunpack.c.l.b16 %v156
    %v279 = vunpack.c.l.b16 %v157
    %v280 = vpack.c.b16 %v249, %v248
    %v281 = vpack.c.b16 %v251, %v250
    %v282 = vpack.c.b16 %v253, %v252
    %v283 = vpack.c.b16 %v255, %v254
    %v284 = vpack.c.b16 %v257, %v256
    %v285 = vpack.c.b16 %v259, %v258
    %v286 = vpack.c.b16 %v261, %v260
    %v287 = vpack.c.b16 %v263, %v262
    %v288 = vpack.c.b16 %v265, %v264
    %v289 = vpack.c.b16 %v267, %v266
    %v290 = vpack.c.b16 %v269, %v268
    %v291 = vpack.c.b16 %v271, %v270
    %v292 = vpack.c.b16 %v273, %v272
    %v293 = vpack.c.b16 %v275, %v274
    %v294 = vpack.c.b16 %v277, %v276
    %v295 = vpack.c.b16 %v279, %v278
    %312 = vmatprep.subr.bf16.mxu0 0
    %313 = vmatpush1.bf16.msra.mxu0 %v287
    %314 = vmatprep.subr.bf16.mxu0 0
    %315 = vmatpush1.bf16.msra.mxu0 %v286
    %316 = vmatprep.subr.bf16.mxu0 0
    %317 = vmatpush1.bf16.msra.mxu0 %v285
    %318 = vmatprep.subr.bf16.mxu0 0
    %319 = vmatpush1.bf16.msra.mxu0 %v284
    %320 = vmatprep.subr.bf16.mxu0 0
    %321 = vmatpush1.bf16.msra.mxu0 %v283
    %322 = vmatprep.subr.bf16.mxu0 0
    %323 = vmatpush1.bf16.msra.mxu0 %v282
    %324 = vmatprep.subr.bf16.mxu0 0
    %325 = vmatpush1.bf16.msra.mxu0 %v281
    %326 = vmatprep.subr.bf16.mxu0 0
    %327 = vmatpush1.bf16.msra.mxu0 %v280
    %328 = vmatprep.subr.bf16.mxu0 0
    %329 = vmatpush2.bf16.msra.mxu0 %v295
    %330 = vmatprep.subr.bf16.mxu0 0
    %331 = vmatpush2.bf16.msra.mxu0 %v294
    %332 = vmatprep.subr.bf16.mxu0 0
    %333 = vmatpush2.bf16.msra.mxu0 %v293
    %334 = vmatprep.subr.bf16.mxu0 0
    %335 = vmatpush2.bf16.msra.mxu0 %v292
    %336 = vmatprep.subr.bf16.mxu0 0
    %337 = vmatpush2.bf16.msra.mxu0 %v291
    %338 = vmatprep.subr.bf16.mxu0 0
    %339 = vmatpush2.bf16.msra.mxu0 %v290
    %340 = vmatprep.subr.bf16.mxu0 0
    %341 = vmatpush2.bf16.msra.mxu0 %v289
    %342 = vmatprep.subr.bf16.mxu0 0
    %343 = vmatpush2.bf16.msra.mxu0 %v288
    %344 = vmatprep.mubr.bf16.mxu0 %v119
    %345 = vmatmul.mubr.bf16.gmra.mxu0 %v118
    %v346 = vpop.f32.mrf.mxu0
    %v347 = vadd.f32 %v214, %v346
    %v348 = vpop.f32.mrf.mxu0
    %v349 = vpop.f32.mrf.mxu0
    %v350 = vadd.f32 %v214, %v349
    %v351 = vpop.f32.mrf.mxu0
    %352 = vmatprep.mubr.bf16.mxu0 %v121
    %353 = vmatmul.mubr.bf16.gmra.mxu0 %v120
    %v354 = vpop.f32.mrf.mxu0
    %v355 = vadd.f32 %v214, %v354
    %v356 = vpop.f32.mrf.mxu0
    %v357 = vpop.f32.mrf.mxu0
    %v358 = vadd.f32 %v214, %v357
    %v359 = vpop.f32.mrf.mxu0
    %360 = vmatprep.mubr.bf16.mxu0 %v123
    %361 = vmatmul.mubr.bf16.gmra.mxu0 %v122
    %v362 = vpop.f32.mrf.mxu0
    %v363 = vadd.f32 %v214, %v362
    %v364 = vpop.f32.mrf.mxu0
    %v365 = vpop.f32.mrf.mxu0
    %v366 = vadd.f32 %v214, %v365
    %v367 = vpop.f32.mrf.mxu0
    %368 = vmatprep.mubr.bf16.mxu0 %v125
    %369 = vmatmul.mubr.bf16.gmra.mxu0 %v124
    %v370 = vpop.f32.mrf.mxu0
    %v371 = vadd.f32 %v214, %v370
    %v372 = vpop.f32.mrf.mxu0
    %v373 = vpop.f32.mrf.mxu0
    %v374 = vadd.f32 %v214, %v373
    %v375 = vpop.f32.mrf.mxu0
    %376 = vdwg.mxu0
    %v377 = vmax.f32 %v347, 0.0
    %v378 = vmax.f32 %v350, 0.0
    %v379 = vmax.f32 %v355, 0.0
    %v380 = vmax.f32 %v358, 0.0
    %v381 = vmax.f32 %v363, 0.0
    %v382 = vmax.f32 %v366, 0.0
    %v383 = vmax.f32 %v371, 0.0
    %v384 = vmax.f32 %v374, 0.0
    %v385 = vpack.c.bf16 %v378, %v377
    %v386 = vpack.c.bf16 %v380, %v379
    %v387 = vpack.c.bf16 %v382, %v381
    %v388 = vpack.c.bf16 %v384, %v383
    %v390 = vlaneseq
    %v391 = vshrl.u32 %v390, 7
    %v392 = vsub.s32 0, %v391
    %v393 = vrot.slane %v207, %v392
    %v411 = vunpack.c.l.b16 %v158
    %v412 = vunpack.c.l.b16 %v159
    %v413 = vunpack.c.l.b16 %v160
    %v414 = vunpack.c.l.b16 %v161
    %v415 = vunpack.c.l.b16 %v162
    %v416 = vunpack.c.l.b16 %v163
    %v417 = vunpack.c.l.b16 %v164
    %v418 = vunpack.c.l.b16 %v165
    %v419 = vunpack.c.l.b16 %v166
    %v420 = vunpack.c.l.b16 %v167
    %v421 = vunpack.c.l.b16 %v168
    %v422 = vunpack.c.l.b16 %v169
    %v423 = vunpack.c.l.b16 %v170
    %v424 = vunpack.c.l.b16 %v171
    %v425 = vunpack.c.l.b16 %v172
    %v426 = vunpack.c.l.b16 %v173
    %v427 = vpack.c.b16 %v412, %v411
    %v428 = vpack.c.b16 %v414, %v413
    %v429 = vpack.c.b16 %v416, %v415
    %v430 = vpack.c.b16 %v418, %v417
    %v431 = vpack.c.b16 %v420, %v419
    %v432 = vpack.c.b16 %v422, %v421
    %v433 = vpack.c.b16 %v424, %v423
    %v434 = vpack.c.b16 %v426, %v425
    %443 = vmatprep.subr.bf16.mxu0 0
    %444 = vmatpush1.bf16.msra.mxu0 %v434
    %445 = vmatprep.subr.bf16.mxu0 0
    %446 = vmatpush1.bf16.msra.mxu0 %v433
    %447 = vmatprep.subr.bf16.mxu0 0
    %448 = vmatpush1.bf16.msra.mxu0 %v432
    %449 = vmatprep.subr.bf16.mxu0 0
    %450 = vmatpush1.bf16.msra.mxu0 %v431
    %451 = vmatprep.subr.bf16.mxu0 0
    %452 = vmatpush1.bf16.msra.mxu0 %v430
    %453 = vmatprep.subr.bf16.mxu0 0
    %454 = vmatpush1.bf16.msra.mxu0 %v429
    %455 = vmatprep.subr.bf16.mxu0 0
    %456 = vmatpush1.bf16.msra.mxu0 %v428
    %457 = vmatprep.subr.bf16.mxu0 0
    %458 = vmatpush1.bf16.msra.mxu0 %v427
    %459 = vmatprep.subr.bf16.mxu0 0
    %460 = vmatpush2.bf16.msra.mxu0 0
    %461 = vmatprep.subr.bf16.mxu0 0
    %462 = vmatpush2.bf16.msra.mxu0 0
    %463 = vmatprep.subr.bf16.mxu0 0
    %464 = vmatpush2.bf16.msra.mxu0 0
    %465 = vmatprep.subr.bf16.mxu0 0
    %466 = vmatpush2.bf16.msra.mxu0 0
    %467 = vmatprep.subr.bf16.mxu0 0
    %468 = vmatpush2.bf16.msra.mxu0 0
    %469 = vmatprep.subr.bf16.mxu0 0
    %470 = vmatpush2.bf16.msra.mxu0 0
    %471 = vmatprep.subr.bf16.mxu0 0
    %472 = vmatpush2.bf16.msra.mxu0 0
    %473 = vmatprep.subr.bf16.mxu0 0
    %474 = vmatpush2.bf16.msra.mxu0 0
    %475 = vmatprep.mubr.bf16.mxu0 0
    %476 = vmatmul.mubr.bf16.gmra.mxu0 %v385
    %v477 = vpop.f32.mrf.mxu0
    %v478 = vadd.f32 %v393, %v477
    %v479 = vpop.f32.mrf.mxu0
    %v480 = vpop.f32.mrf.mxu0
    %v481 = vadd.f32 %v393, %v480
    %v482 = vpop.f32.mrf.mxu0
    %483 = vmatprep.mubr.bf16.mxu0 0
    %484 = vmatmul.mubr.bf16.gmra.mxu0 %v386
    %v485 = vpop.f32.mrf.mxu0
    %v486 = vadd.f32 %v393, %v485
    %v487 = vpop.f32.mrf.mxu0
    %v488 = vpop.f32.mrf.mxu0
    %v489 = vadd.f32 %v393, %v488
    %v490 = vpop.f32.mrf.mxu0
    %491 = vmatprep.mubr.bf16.mxu0 0
    %492 = vmatmul.mubr.bf16.gmra.mxu0 %v387
    %v493 = vpop.f32.mrf.mxu0
    %v494 = vadd.f32 %v393, %v493
    %v495 = vpop.f32.mrf.mxu0
    %v496 = vpop.f32.mrf.mxu0
    %v497 = vadd.f32 %v393, %v496
    %v498 = vpop.f32.mrf.mxu0
    %499 = vmatprep.mubr.bf16.mxu0 0
    %500 = vmatmul.mubr.bf16.gmra.mxu0 %v388
    %v501 = vpop.f32.mrf.mxu0
    %v502 = vadd.f32 %v393, %v501
    %v503 = vpop.f32.mrf.mxu0
    %v504 = vpop.f32.mrf.mxu0
    %v505 = vadd.f32 %v393, %v504
    %v506 = vpop.f32.mrf.mxu0
    %507 = vdwg.mxu0
    %v508 = vmax.f32 %v478, 0.0
    %v509 = vmax.f32 %v481, 0.0
    %v510 = vmax.f32 %v486, 0.0
    %v511 = vmax.f32 %v489, 0.0
    %v512 = vmax.f32 %v494, 0.0
    %v513 = vmax.f32 %v497, 0.0
    %v514 = vmax.f32 %v502, 0.0
    %v515 = vmax.f32 %v505, 0.0
    %v516 = vpack.c.bf16 %v509, %v508
    %v517 = vpack.c.bf16 %v511, %v510
    %v518 = vpack.c.bf16 %v513, %v512
    %v519 = vpack.c.bf16 %v515, %v514
    %v521 = vlaneseq
    %v522 = vshrl.u32 %v521, 7
    %v523 = vsub.s32 0, %v522
    %v524 = vrot.slane %v208, %v523
    %v542 = vunpack.c.l.b16 %v174
    %v543 = vunpack.c.l.b16 %v175
    %v544 = vunpack.c.l.b16 %v176
    %v545 = vunpack.c.l.b16 %v177
    %v546 = vunpack.c.l.b16 %v178
    %v547 = vunpack.c.l.b16 %v179
    %v548 = vunpack.c.l.b16 %v180
    %v549 = vunpack.c.l.b16 %v181
    %v550 = vunpack.c.l.b16 %v182
    %v551 = vunpack.c.l.b16 %v183
    %v552 = vunpack.c.l.b16 %v184
    %v553 = vunpack.c.l.b16 %v185
    %v554 = vunpack.c.l.b16 %v186
    %v555 = vunpack.c.l.b16 %v187
    %v556 = vunpack.c.l.b16 %v188
    %v557 = vunpack.c.l.b16 %v189
    %v558 = vpack.c.b16 %v543, %v542
    %v559 = vpack.c.b16 %v545, %v544
    %v560 = vpack.c.b16 %v547, %v546
    %v561 = vpack.c.b16 %v549, %v548
    %v562 = vpack.c.b16 %v551, %v550
    %v563 = vpack.c.b16 %v553, %v552
    %v564 = vpack.c.b16 %v555, %v554
    %v565 = vpack.c.b16 %v557, %v556
    %574 = vmatprep.subr.bf16.mxu0 0
    %575 = vmatpush1.bf16.msra.mxu0 %v565
    %576 = vmatprep.subr.bf16.mxu0 0
    %577 = vmatpush1.bf16.msra.mxu0 %v564
    %578 = vmatprep.subr.bf16.mxu0 0
    %579 = vmatpush1.bf16.msra.mxu0 %v563
    %580 = vmatprep.subr.bf16.mxu0 0
    %581 = vmatpush1.bf16.msra.mxu0 %v562
    %582 = vmatprep.subr.bf16.mxu0 0
    %583 = vmatpush1.bf16.msra.mxu0 %v561
    %584 = vmatprep.subr.bf16.mxu0 0
    %585 = vmatpush1.bf16.msra.mxu0 %v560
    %586 = vmatprep.subr.bf16.mxu0 0
    %587 = vmatpush1.bf16.msra.mxu0 %v559
    %588 = vmatprep.subr.bf16.mxu0 0
    %589 = vmatpush1.bf16.msra.mxu0 %v558
    %590 = vmatprep.subr.bf16.mxu0 0
    %591 = vmatpush2.bf16.msra.mxu0 0
    %592 = vmatprep.subr.bf16.mxu0 0
    %593 = vmatpush2.bf16.msra.mxu0 0
    %594 = vmatprep.subr.bf16.mxu0 0
    %595 = vmatpush2.bf16.msra.mxu0 0
    %596 = vmatprep.subr.bf16.mxu0 0
    %597 = vmatpush2.bf16.msra.mxu0 0
    %598 = vmatprep.subr.bf16.mxu0 0
    %599 = vmatpush2.bf16.msra.mxu0 0
    %600 = vmatprep.subr.bf16.mxu0 0
    %601 = vmatpush2.bf16.msra.mxu0 0
    %602 = vmatprep.subr.bf16.mxu0 0
    %603 = vmatpush2.bf16.msra.mxu0 0
    %604 = vmatprep.subr.bf16.mxu0 0
    %605 = vmatpush2.bf16.msra.mxu0 0
    %606 = vmatprep.mubr.bf16.mxu0 0
    %607 = vmatmul.mubr.bf16.gmra.mxu0 %v516
    %v608 = vpop.f32.mrf.mxu0
    %v609 = vadd.f32 %v524, %v608
    %v610 = vpop.f32.mrf.mxu0
    %v611 = vpop.f32.mrf.mxu0
    %v612 = vadd.f32 %v524, %v611
    %v613 = vpop.f32.mrf.mxu0
    %614 = vmatprep.mubr.bf16.mxu0 0
    %615 = vmatmul.mubr.bf16.gmra.mxu0 %v517
    %v616 = vpop.f32.mrf.mxu0
    %v617 = vadd.f32 %v524, %v616
    %v618 = vpop.f32.mrf.mxu0
    %v619 = vpop.f32.mrf.mxu0
    %v620 = vadd.f32 %v524, %v619
    %v621 = vpop.f32.mrf.mxu0
    %622 = vmatprep.mubr.bf16.mxu0 0
    %623 = vmatmul.mubr.bf16.gmra.mxu0 %v518
    %v624 = vpop.f32.mrf.mxu0
    %v625 = vadd.f32 %v524, %v624
    %v626 = vpop.f32.mrf.mxu0
    %v627 = vpop.f32.mrf.mxu0
    %v628 = vadd.f32 %v524, %v627
    %v629 = vpop.f32.mrf.mxu0
    %630 = vmatprep.mubr.bf16.mxu0 0
    %631 = vmatmul.mubr.bf16.gmra.mxu0 %v519
    %v632 = vpop.f32.mrf.mxu0
    %v633 = vadd.f32 %v524, %v632
    %v634 = vpop.f32.mrf.mxu0
    %v635 = vpop.f32.mrf.mxu0
    %v636 = vadd.f32 %v524, %v635
    %v637 = vpop.f32.mrf.mxu0
    %638 = vdwg.mxu0
    %v639 = vmax.f32 %v609, 0.0
    %v640 = vmax.f32 %v612, 0.0
    %v641 = vmax.f32 %v617, 0.0
    %v642 = vmax.f32 %v620, 0.0
    %v643 = vmax.f32 %v625, 0.0
    %v644 = vmax.f32 %v628, 0.0
    %v645 = vmax.f32 %v633, 0.0
    %v646 = vmax.f32 %v636, 0.0
    %v647 = vpack.c.bf16 %v640, %v639
    %v648 = vpack.c.bf16 %v642, %v641
    %v649 = vpack.c.bf16 %v644, %v643
    %v650 = vpack.c.bf16 %v646, %v645
    %v652 = vlaneseq
    %v653 = vshrl.u32 %v652, 7
    %v654 = vsub.s32 0, %v653
    %v655 = vrot.slane %v209, %v654
    %v656 = vlaneseq
    %v657 = vshrl.u32 %v656, 7
    %v658 = vsub.s32 1, %v657
    %v659 = vrot.slane %v209, %v658
    %v678 = vunpack.c.l.b16 %v190
    %v679 = vunpack.c.h.b16 %v190
    %v680 = vunpack.c.l.b16 %v191
    %v681 = vunpack.c.h.b16 %v191
    %v682 = vunpack.c.l.b16 %v192
    %v683 = vunpack.c.h.b16 %v192
    %v684 = vunpack.c.l.b16 %v193
    %v685 = vunpack.c.h.b16 %v193
    %v686 = vunpack.c.l.b16 %v194
    %v687 = vunpack.c.h.b16 %v194
    %v688 = vunpack.c.l.b16 %v195
    %v689 = vunpack.c.h.b16 %v195
    %v690 = vunpack.c.l.b16 %v196
    %v691 = vunpack.c.h.b16 %v196
    %v692 = vunpack.c.l.b16 %v197
    %v693 = vunpack.c.h.b16 %v197
    %v694 = vunpack.c.l.b16 %v198
    %v695 = vunpack.c.h.b16 %v198
    %v696 = vunpack.c.l.b16 %v199
    %v697 = vunpack.c.h.b16 %v199
    %v698 = vunpack.c.l.b16 %v200
    %v699 = vunpack.c.h.b16 %v200
    %v700 = vunpack.c.l.b16 %v201
    %v701 = vunpack.c.h.b16 %v201
    %v702 = vunpack.c.l.b16 %v202
    %v703 = vunpack.c.h.b16 %v202
    %v704 = vunpack.c.l.b16 %v203
    %v705 = vunpack.c.h.b16 %v203
    %v706 = vunpack.c.l.b16 %v204
    %v707 = vunpack.c.h.b16 %v204
    %v708 = vunpack.c.l.b16 %v205
    %v709 = vunpack.c.h.b16 %v205
    %v710 = vpack.c.b16 %v680, %v678
    %v711 = vpack.c.b16 %v681, %v679
    %v712 = vpack.c.b16 %v684, %v682
    %v713 = vpack.c.b16 %v685, %v683
    %v714 = vpack.c.b16 %v688, %v686
    %v715 = vpack.c.b16 %v689, %v687
    %v716 = vpack.c.b16 %v692, %v690
    %v717 = vpack.c.b16 %v693, %v691
    %v718 = vpack.c.b16 %v696, %v694
    %v719 = vpack.c.b16 %v697, %v695
    %v720 = vpack.c.b16 %v700, %v698
    %v721 = vpack.c.b16 %v701, %v699
    %v722 = vpack.c.b16 %v704, %v702
    %v723 = vpack.c.b16 %v705, %v703
    %v724 = vpack.c.b16 %v708, %v706
    %v725 = vpack.c.b16 %v709, %v707
    %742 = vmatprep.subr.bf16.mxu0 %v725
    %743 = vmatpush1.bf16.msra.mxu0 %v724
    %744 = vmatprep.subr.bf16.mxu0 %v723
    %745 = vmatpush1.bf16.msra.mxu0 %v722
    %746 = vmatprep.subr.bf16.mxu0 %v721
    %747 = vmatpush1.bf16.msra.mxu0 %v720
    %748 = vmatprep.subr.bf16.mxu0 %v719
    %749 = vmatpush1.bf16.msra.mxu0 %v718
    %750 = vmatprep.subr.bf16.mxu0 %v717
    %751 = vmatpush1.bf16.msra.mxu0 %v716
    %752 = vmatprep.subr.bf16.mxu0 %v715
    %753 = vmatpush1.bf16.msra.mxu0 %v714
    %754 = vmatprep.subr.bf16.mxu0 %v713
    %755 = vmatpush1.bf16.msra.mxu0 %v712
    %756 = vmatprep.subr.bf16.mxu0 %v711
    %757 = vmatpush1.bf16.msra.mxu0 %v710
    %758 = vmatprep.subr.bf16.mxu0 0
    %759 = vmatpush2.bf16.msra.mxu0 0
    %760 = vmatprep.subr.bf16.mxu0 0
    %761 = vmatpush2.bf16.msra.mxu0 0
    %762 = vmatprep.subr.bf16.mxu0 0
    %763 = vmatpush2.bf16.msra.mxu0 0
    %764 = vmatprep.subr.bf16.mxu0 0
    %765 = vmatpush2.bf16.msra.mxu0 0
    %766 = vmatprep.subr.bf16.mxu0 0
    %767 = vmatpush2.bf16.msra.mxu0 0
    %768 = vmatprep.subr.bf16.mxu0 0
    %769 = vmatpush2.bf16.msra.mxu0 0
    %770 = vmatprep.subr.bf16.mxu0 0
    %771 = vmatpush2.bf16.msra.mxu0 0
    %772 = vmatprep.subr.bf16.mxu0 0
    %773 = vmatpush2.bf16.msra.mxu0 0
    %774 = vmatprep.mubr.bf16.mxu0 0
    %775 = vmatmul.mubr.bf16.gmra.mxu0 %v647
    %v776 = vpop.f32.mrf.mxu0
    %v777 = vadd.f32 %v655, %v776
    %v778 = vpop.f32.mrf.mxu0
    %v779 = vadd.f32 %v659, %v778
    %v780 = vpop.f32.mrf.mxu0
    %v781 = vadd.f32 %v655, %v780
    %v782 = vpop.f32.mrf.mxu0
    %v783 = vadd.f32 %v659, %v782
    %784 = vmatprep.mubr.bf16.mxu0 0
    %785 = vmatmul.mubr.bf16.gmra.mxu0 %v648
    %v786 = vpop.f32.mrf.mxu0
    %v787 = vadd.f32 %v655, %v786
    %v788 = vpop.f32.mrf.mxu0
    %v789 = vadd.f32 %v659, %v788
    %v790 = vpop.f32.mrf.mxu0
    %v791 = vadd.f32 %v655, %v790
    %v792 = vpop.f32.mrf.mxu0
    %v793 = vadd.f32 %v659, %v792
    %794 = vmatprep.mubr.bf16.mxu0 0
    %795 = vmatmul.mubr.bf16.gmra.mxu0 %v649
    %v796 = vpop.f32.mrf.mxu0
    %v797 = vadd.f32 %v655, %v796
    %v798 = vpop.f32.mrf.mxu0
    %v799 = vadd.f32 %v659, %v798
    %v800 = vpop.f32.mrf.mxu0
    %v801 = vadd.f32 %v655, %v800
    %v802 = vpop.f32.mrf.mxu0
    %v803 = vadd.f32 %v659, %v802
    %804 = vmatprep.mubr.bf16.mxu0 0
    %805 = vmatmul.mubr.bf16.gmra.mxu0 %v650
    %v806 = vpop.f32.mrf.mxu0
    %v807 = vadd.f32 %v655, %v806
    %v808 = vpop.f32.mrf.mxu0
    %v809 = vadd.f32 %v659, %v808
    %v810 = vpop.f32.mrf.mxu0
    %v811 = vadd.f32 %v655, %v810
    %v812 = vpop.f32.mrf.mxu0
    %v813 = vadd.f32 %v659, %v812
    %814 = vdwg.mxu0
    %v815 = vsub.f32 0.0, %v777
    %v816 = vsub.f32 0.0, %v779
    %v817 = vsub.f32 0.0, %v781
    %v818 = vsub.f32 0.0, %v783
    %v819 = vsub.f32 0.0, %v787
    %v820 = vsub.f32 0.0, %v789
    %v821 = vsub.f32 0.0, %v791
    %v822 = vsub.f32 0.0, %v793
    %v823 = vsub.f32 0.0, %v797
    %v824 = vsub.f32 0.0, %v799
    %v825 = vsub.f32 0.0, %v801
    %v826 = vsub.f32 0.0, %v803
    %v827 = vsub.f32 0.0, %v807
    %v828 = vsub.f32 0.0, %v809
    %v829 = vsub.f32 0.0, %v811
    %v830 = vsub.f32 0.0, %v813
    %v831 = vmul.f32 %v815, 1.442695
    %v832 = vpow.pop %v831
    %v833 = vmul.f32 %v816, 1.442695
    %v834 = vpow.pop %v833
    %v835 = vmul.f32 %v817, 1.442695
    %v836 = vpow.pop %v835
    %v837 = vmul.f32 %v818, 1.442695
    %v838 = vpow.pop %v837
    %v839 = vmul.f32 %v819, 1.442695
    %v840 = vpow.pop %v839
    %v841 = vmul.f32 %v820, 1.442695
    %v842 = vpow.pop %v841
    %v843 = vmul.f32 %v821, 1.442695
    %v844 = vpow.pop %v843
    %v845 = vmul.f32 %v822, 1.442695
    %v846 = vpow.pop %v845
    %v847 = vmul.f32 %v823, 1.442695
    %v848 = vpow.pop %v847
    %v849 = vmul.f32 %v824, 1.442695
    %v850 = vpow.pop %v849
    %v851 = vmul.f32 %v825, 1.442695
    %v852 = vpow.pop %v851
    %v853 = vmul.f32 %v826, 1.442695
    %v854 = vpow.pop %v853
    %v855 = vmul.f32 %v827, 1.442695
    %v856 = vpow.pop %v855
    %v857 = vmul.f32 %v828, 1.442695
    %v858 = vpow.pop %v857
    %v859 = vmul.f32 %v829, 1.442695
    %v860 = vpow.pop %v859
    %v861 = vmul.f32 %v830, 1.442695
    %v862 = vpow.pop %v861
    %v863 = vadd.f32 %v832, 1.0
    %v864 = vadd.f32 %v834, 1.0
    %v865 = vadd.f32 %v836, 1.0
    %v866 = vadd.f32 %v838, 1.0
    %v867 = vadd.f32 %v840, 1.0
    %v868 = vadd.f32 %v842, 1.0
    %v869 = vadd.f32 %v844, 1.0
    %v870 = vadd.f32 %v846, 1.0
    %v871 = vadd.f32 %v848, 1.0
    %v872 = vadd.f32 %v850, 1.0
    %v873 = vadd.f32 %v852, 1.0
    %v874 = vadd.f32 %v854, 1.0
    %v875 = vadd.f32 %v856, 1.0
    %v876 = vadd.f32 %v858, 1.0
    %v877 = vadd.f32 %v860, 1.0
    %v878 = vadd.f32 %v862, 1.0
    %v879 = vrcp.pop %v863
    %v880 = vmul.f32 1.0, %v879
    %v881 = vrcp.pop %v864
    %v882 = vmul.f32 1.0, %v881
    %v883 = vrcp.pop %v865
    %v884 = vmul.f32 1.0, %v883
    %v885 = vrcp.pop %v866
    %v886 = vmul.f32 1.0, %v885
    %v887 = vrcp.pop %v867
    %v888 = vmul.f32 1.0, %v887
    %v889 = vrcp.pop %v868
    %v890 = vmul.f32 1.0, %v889
    %v891 = vrcp.pop %v869
    %v892 = vmul.f32 1.0, %v891
    %v893 = vrcp.pop %v870
    %v894 = vmul.f32 1.0, %v893
    %v895 = vrcp.pop %v871
    %v896 = vmul.f32 1.0, %v895
    %v897 = vrcp.pop %v872
    %v898 = vmul.f32 1.0, %v897
    %v899 = vrcp.pop %v873
    %v900 = vmul.f32 1.0, %v899
    %v901 = vrcp.pop %v874
    %v902 = vmul.f32 1.0, %v901
    %v903 = vrcp.pop %v875
    %v904 = vmul.f32 1.0, %v903
    %v905 = vrcp.pop %v876
    %v906 = vmul.f32 1.0, %v905
    %v907 = vrcp.pop %v877
    %v908 = vmul.f32 1.0, %v907
    %v909 = vrcp.pop %v878
    %v910 = vmul.f32 1.0, %v909
    %911 = vst [vmem:[#allocation11] sm:$0xff] %v880
    %912 = vst [vmem:[#allocation11 + $0x8] sm:$0xff] %v882
    %913 = vst [vmem:[#allocation11 + $0x10] sm:$0xff] %v884
    %914 = vst [vmem:[#allocation11 + $0x18] sm:$0xff] %v886
    %915 = vst [vmem:[#allocation11 + $0x20] sm:$0xff] %v888
    %916 = vst [vmem:[#allocation11 + $0x28] sm:$0xff] %v890
    %917 = vst [vmem:[#allocation11 + $0x30] sm:$0xff] %v892
    %918 = vst [vmem:[#allocation11 + $0x38] sm:$0xff] %v894
    %919 = vst [vmem:[#allocation11 + $0x40] sm:$0xff] %v896
    %920 = vst [vmem:[#allocation11 + $0x48] sm:$0xff] %v898
    %921 = vst [vmem:[#allocation11 + $0x50] sm:$0xff] %v900
    %922 = vst [vmem:[#allocation11 + $0x58] sm:$0xff] %v902
    %923 = vst [vmem:[#allocation11 + $0x60] sm:$0xff] %v904
    %924 = vst [vmem:[#allocation11 + $0x68] sm:$0xff] %v906
    %925 = vst [vmem:[#allocation11 + $0x70] sm:$0xff] %v908
    %926 = vst [vmem:[#allocation11 + $0x78] sm:$0xff] %v910
    // Predicated region
    $region58: #{tpu_custom_call.1} parent=1 // pred_check
      _
    $region59: #{tpu_custom_call.1} parent=1 // pred_check_branch
      %928 = sbr.rel (0) target = $region61
    $region60: #{tpu_custom_call.1} parent=1 // pred_region
      %s930 = ssub.s32 2048, 2048
      %931 = vsyncadd [#allocation4], %s930
      %s932 = sshll.u32 [#allocation11], 4
      %s933 = int_to_ptr.vmem [resolvable:$true] %s932
      %938 = dma.vmem_to_hbm [thread:$0]  %s933, 2048, %s9, [#allocation4], 256, 256, 16
    $region61: #{tpu_custom_call.1} parent=1 // pred_fallthru
      _
    // Predicated region
    $region62: #{tpu_custom_call.1} parent=1 // pred_check
      _
    $region63: #{tpu_custom_call.1} parent=1 // pred_check_branch
      %940 = sbr.rel (0) target = $region65
    $region64: #{tpu_custom_call.1} parent=1 // pred_region
      %941 = dma.done [#allocation4], 2048
    $region65: #{tpu_custom_call.1} parent=1 // pred_fallthru
      _
    %942 = vsyncpa [#allocation3], 1
    %943 = vsyncpa [#allocation6], 1
    %944 = vsyncpa [#allocation9], 1
    %945 = vsyncpa [#allocation4], 1

</llo_original>
